<compile_context>
chip_gen: v6e
topology: v6e:2x2x1
jax: 0.10.0
libtpu: 0.0.40
codegen_flags: <defaults>
</compile_context>

<pallas_src>
import math

import jax
import jax.numpy as jnp
from jax import lax
from jax.experimental import pallas as pl
from jax.experimental.pallas import tpu as pltpu


def _round_up(x, m):
    return ((x + m - 1) // m) * m


def _round_down(x, m):
    return (x // m) * m


def _vmem_ceiling_bytes():
    """~80% of this chip's physical VMEM (fallback: v7x-safe 64 MiB)."""
    try:
        cap = int(pltpu.get_tpu_info().vmem_capacity_bytes)
    except Exception:
        cap = 64 << 20
    return max(32 << 20, int(cap * 0.8))


def _choose_tile_l(L, B, max_tile, row_bytes, budget_bytes):
    """Sequence-tile length: multiple of 8, VMEM-aware, >=2 grid steps when B == 1."""
    L8 = _round_up(L, 8)
    cap = min(max_tile, L8)
    if row_bytes > 0:
        cap = min(cap, max(8, _round_down(budget_bytes // row_bytes, 8)))
    if B == 1 and L8 > 8:
        # Keep at least two sequence tiles so both v7x TensorCores get work.
        cap = min(cap, max(8, _round_up(L8 // 2, 8)))
    cap = max(8, _round_down(cap, 8))
    if L % 8 == 0:
        # Prefer a divisor of L (no partial boundary tile) if it is not much smaller than cap.
        t = cap
        while t >= 8:
            if L % t == 0:
                if 2 * t >= cap:
                    return t
                break
            t -= 8
    return cap


def _token_embedding_kernel(x_ref, w_ref, o_ref):
    # x_ref : (halo_rows, C)   circularly haloed sequence of the current batch (VMEM resident)
    # w_ref : (3*C, D)         fused 3-tap weight, rows = [W_{t-1}; W_t; W_{t+1}]
    # o_ref : (tl, D)
    tl = o_ref.shape[0]
    C = x_ref.shape[1]
    base = pl.multiple_of(pl.program_id(1) * tl, 8)         # sublane-aligned dynamic start
    xs = x_ref[pl.ds(base, tl + 8), :]                      # 8-multiple aligned window
    wd = w_ref.dtype
    # Three small MXU pushes (huge K-slack); avoids the lane-concat relayout entirely.
    y = jnp.dot(xs[0:tl].astype(wd), w_ref[0:C, :],
                preferred_element_type=jnp.float32)
    y = y + jnp.dot(xs[1:tl + 1].astype(wd), w_ref[C:2 * C, :],
                    preferred_element_type=jnp.float32)
    y = y + jnp.dot(xs[2:tl + 2].astype(wd), w_ref[2 * C:3 * C, :],
                    preferred_element_type=jnp.float32)
    o_ref[...] = y.astype(o_ref.dtype)


def token_embedding(x, weight_pt, *, compute_dtype=None, out_dtype=None, max_tile_l=1024):
    """Circular Conv1d(k=3, padding=1, bias=False) token embedding.

    x         : (B, L, c_in)
    weight_pt : (d_model, c_in, 3)  (PyTorch layout)
    returns   : (B, L, d_model)
    """
    B, L, C = x.shape
    D, C2, K = weight_pt.shape
    assert K == 3 and C2 == C

    out_dtype = x.dtype if out_dtype is None else jnp.dtype(out_dtype)
    mxu_dtype = x.dtype if compute_dtype is None else jnp.dtype(compute_dtype)

    # Fused 3-tap weight: rows are [W_{t-1}; W_t; W_{t+1}] (tap-major / channel-minor).
    w_3cd = jnp.transpose(weight_pt, (2, 1, 0)).reshape(3 * C, D).astype(mxu_dtype)

    in_isz = jnp.dtype(x.dtype).itemsize
    w_isz = jnp.dtype(mxu_dtype).itemsize
    o_isz = jnp.dtype(out_dtype).itemsize

    # --- VMEM-aware sequence-tile selection (the kernel is output-store bound) ---
    ceiling = _vmem_ceiling_bytes()
    approx_halo = _round_up(L, 8) + max_tile_l + 8
    fixed = 2 * approx_halo * C * in_isz + 2 * 3 * C * D * w_isz        # resident x + weight (dbl-buffered)
    row_bytes = 2 * D * o_isz + 2 * D * 4 + 6 * C * in_isz              # out dbl-buffer + f32 accum + operands
    budget = max(ceiling - fixed - (4 << 20), 64 * row_bytes)
    tl = _choose_tile_l(L, B, max_tile_l, row_bytes, budget)

    n_l = -(-L // tl)                        # cdiv; any boundary block is masked on store
    halo_rows = n_l * tl + 8

    # Circular halo: [x[L-1], x[0..L-1], x[0], zero pad]. Rows beyond L+1 only feed masked
    # (discarded) boundary outputs. Safe for any L >= 1 (no pad-wider-than-length edge case).
    parts = [x[:, -1:, :], x, x[:, :1, :]]
    pad_rows = halo_rows - (L + 2)
    if pad_rows > 0:
        parts.append(jnp.zeros((B, pad_rows, C), x.dtype))
    x_halo = jnp.concatenate(parts, axis=1)                              # (B, halo_rows, C)

    x_blk = halo_rows * C * in_isz
    w_blk = 3 * C * D * w_isz
    o_blk = tl * D * o_isz
    needed = 2 * (x_blk + w_blk + o_blk) + 2 * tl * D * 4 + (4 << 20)
    vmem_limit = int(min(max(needed, 32 << 20), ceiling))

    cost = pl.CostEstimate(
        flops=2 * B * n_l * tl * 3 * C * D,
        transcendentals=0,
        bytes_accessed=B * (x_blk + n_l * o_blk) + w_blk,
    )

    out = pl.pallas_call(
        _token_embedding_kernel,
        out_shape=jax.ShapeDtypeStruct((B, L, D), out_dtype),
        grid_spec=pltpu.PrefetchScalarGridSpec(
            num_scalar_prefetch=0,
            grid=(B, n_l),
            in_specs=[
                # Haloed sequence of the current batch: DMAed once per batch, resident across
                # all sequence tiles.
                # TODO(synk): for very long sequences on v7x (64 MiB VMEM), switch this to a
                # windowed (tl + 8)-row block instead of full-sequence residency.
                pl.BlockSpec((pl.Squeezed(), halo_rows, C), lambda b, i: (b, 0, 0)),
                # Fused weight slab: one full-width D tile, never re-DMAed.
                pl.BlockSpec((3 * C, D), lambda b, i: (0, 0)),
            ],
            out_specs=pl.BlockSpec((pl.Squeezed(), tl, D), lambda b, i: (b, i, 0)),
        ),
        compiler_params=pltpu.CompilerParams(
            dimension_semantics=("parallel", "parallel"),
            vmem_limit_bytes=vmem_limit,
        ),
        cost_estimate=cost,
    )(x_halo, w_3cd)
    return out


def init_conv_weight(key, c_in, d_model, kernel_size=3):
    """kaiming_normal_(mode='fan_in', nonlinearity='leaky_relu', a=0) like PyTorch.

    Returns weight in PyTorch layout (d_model, c_in, K)."""
    fan_in = c_in * kernel_size
    std = math.sqrt(2.0) / math.sqrt(fan_in)
    return std * jax.random.normal(key, (d_model, c_in, kernel_size), jnp.float32)


def reference_conv(x, weight_pt):
    """Pure-JAX reference: circular-pad Conv1d (NCL layout, bias=False)."""
    x_ncl = jnp.transpose(x, (0, 2, 1))
    x_pad = jnp.concatenate([x_ncl[:, :, -1:], x_ncl, x_ncl[:, :, :1]], axis=2)
    y = lax.conv_general_dilated(
        x_pad, weight_pt, window_strides=(1,), padding="VALID",
        dimension_numbers=("NCH", "OIH", "NCH"))
    return jnp.transpose(y, (0, 2, 1))  # (B, L, d_model)


if __name__ == "__main__":
    key = jax.random.PRNGKey(0)
    kx, kw, kx2, kw2, kx3, kw3 = jax.random.split(key, 6)

    # Small shapes implied by the module: batch=2, seq=8, c_in=4, d_model=32.
    B, L, c_in, d_model = 2, 8, 4, 32
    x = jax.random.normal(kx, (B, L, c_in), jnp.float32)
    w_pt = init_conv_weight(kw, c_in, d_model)                     # (d_model, c_in, 3)

    out = jax.block_until_ready(token_embedding(x, w_pt))
    ref = reference_conv(x, w_pt)
    assert out.shape == (B, L, d_model)
    assert jnp.allclose(out, ref, rtol=2e-3, atol=2e-3), "f32 mismatch vs reference conv"

    # bf16 MXU operands / f32 accumulate (v6e / v7x fast path), looser tolerance.
    out_bf16 = jax.block_until_ready(token_embedding(x, w_pt, compute_dtype=jnp.bfloat16))
    assert jnp.allclose(out_bf16, ref, rtol=5e-2, atol=5e-2), "bf16 mismatch vs reference"

    # Larger shape: B=1 (forces >= 2 sequence tiles for v7x megacore), d_model=320 (not a
    # 128-multiple: exact-shape output, no post-call slice), L=1024 tiled along the sequence.
    B2, L2, c2, d2 = 1, 1024, 7, 320
    x2 = jax.random.normal(kx2, (B2, L2, c2), jnp.float32)
    w2 = init_conv_weight(kw2, c2, d2)
    out2 = jax.block_until_ready(token_embedding(x2, w2))
    ref2 = reference_conv(x2, w2)
    assert out2.shape == (B2, L2, d2)
    assert jnp.allclose(out2, ref2, rtol=2e-3, atol=2e-3), "tiled f32 mismatch vs reference"

    # Awkward L (= 8 * prime): exercises the non-dividing tile / masked boundary-block path
    # instead of collapsing to tl=8.
    B3, L3, c3, d3 = 1, 1048, 5, 256
    x3 = jax.random.normal(kx3, (B3, L3, c3), jnp.float32)
    w3 = init_conv_weight(kw3, c3, d3)
    out3 = jax.block_until_ready(token_embedding(x3, w3))
    ref3 = reference_conv(x3, w3)
    assert out3.shape == (B3, L3, d3)
    assert jnp.allclose(out3, ref3, rtol=2e-3, atol=2e-3), "partial-tile f32 mismatch vs reference"

    print("KERNEL_OK")
</pallas_src>

<mosaic_0001>
module attributes {stable_mosaic.version = 11 : i64} {
  func.func @_token_embedding_kernel(%arg0: i32, %arg1: i32, %arg2: memref<1x16x4xf32, #tpu.memory_space<vmem>>, %arg3: memref<12x32xf32, #tpu.memory_space<vmem>>, %arg4: memref<1x8x32xf32, #tpu.memory_space<vmem>>) attributes {dimension_semantics = [#tpu.dimension_semantics<parallel>, #tpu.dimension_semantics<parallel>], iteration_bounds = array<i64: 2, 1>, scalar_prefetch = 0 : i64, scratch_operands = 0 : i64, tpu.core_type = #tpu.core_type<tc>, window_params = [{transform_indices = @transform_0, window_bounds = array<i64: 1, 16, 4>}, {pipeline_mode = #tpu.pipeline_mode<synchronous>, transform_indices = @transform_1, window_bounds = array<i64: 12, 32>}, {transform_indices = @transform_2, window_bounds = array<i64: 1, 8, 32>}]} {
    %c8_i32 = arith.constant 8 : i32
    %0 = arith.muli %arg1, %c8_i32 : i32
    %1 = tpu.assume_multiple %0, 8 : i32
    %c0 = arith.constant 0 : index
    %2 = arith.index_cast %1 : i32 to index
    %c0_0 = arith.constant 0 : index
    %3 = vector.load %arg2[%c0, %2, %c0_0] : memref<1x16x4xf32, #tpu.memory_space<vmem>>, vector<1x16x4xf32>
    %4 = vector.shape_cast %3 : vector<1x16x4xf32> to vector<16x4xf32>
    %5 = vector.extract_strided_slice %4 {offsets = [0, 0], sizes = [8, 4], strides = [1, 1]} : vector<16x4xf32> to vector<8x4xf32>
    %c0_1 = arith.constant 0 : index
    %c0_2 = arith.constant 0 : index
    %6 = vector.load %arg3[%c0_1, %c0_2] : memref<12x32xf32, #tpu.memory_space<vmem>>, vector<4x32xf32>
    %cst = arith.constant dense<0.000000e+00> : vector<8x32xf32>
    %7 = tpu.matmul %5, %6, %cst {dimension_numbers = #tpu.dot_dimension_numbers<[1], [0], [0], [1], [0, 0, 1, 1], [], []>} : vector<8x4xf32>, vector<4x32xf32>, vector<8x32xf32> -> vector<8x32xf32>
    %8 = vector.extract_strided_slice %4 {offsets = [1, 0], sizes = [8, 4], strides = [1, 1]} : vector<16x4xf32> to vector<8x4xf32>
    %c4 = arith.constant 4 : index
    %c0_3 = arith.constant 0 : index
    %9 = vector.load %arg3[%c4, %c0_3] : memref<12x32xf32, #tpu.memory_space<vmem>>, vector<4x32xf32>
    %cst_4 = arith.constant dense<0.000000e+00> : vector<8x32xf32>
    %10 = tpu.matmul %8, %9, %cst_4 {dimension_numbers = #tpu.dot_dimension_numbers<[1], [0], [0], [1], [0, 0, 1, 1], [], []>} : vector<8x4xf32>, vector<4x32xf32>, vector<8x32xf32> -> vector<8x32xf32>
    %11 = arith.addf %7, %10 : vector<8x32xf32>
    %12 = vector.extract_strided_slice %4 {offsets = [2, 0], sizes = [8, 4], strides = [1, 1]} : vector<16x4xf32> to vector<8x4xf32>
    %c8 = arith.constant 8 : index
    %c0_5 = arith.constant 0 : index
    %13 = vector.load %arg3[%c8, %c0_5] : memref<12x32xf32, #tpu.memory_space<vmem>>, vector<4x32xf32>
    %cst_6 = arith.constant dense<0.000000e+00> : vector<8x32xf32>
    %14 = tpu.matmul %12, %13, %cst_6 {dimension_numbers = #tpu.dot_dimension_numbers<[1], [0], [0], [1], [0, 0, 1, 1], [], []>} : vector<8x4xf32>, vector<4x32xf32>, vector<8x32xf32> -> vector<8x32xf32>
    %15 = arith.addf %11, %14 : vector<8x32xf32>
    %c0_7 = arith.constant 0 : index
    %c0_8 = arith.constant 0 : index
    %c0_9 = arith.constant 0 : index
    %16 = vector.load %arg4[%c0_7, %c0_8, %c0_9] : memref<1x8x32xf32, #tpu.memory_space<vmem>>, vector<1x8x32xf32>
    %17 = vector.shape_cast %16 : vector<1x8x32xf32> to vector<8x32xf32>
    %18 = vector.shape_cast %15 : vector<8x32xf32> to vector<1x8x32xf32>
    tpu.vector_store %arg4[%c0_7, %c0_8, %c0_9], %18 {strides = array<i32>} : memref<1x8x32xf32, #tpu.memory_space<vmem>>, vector<1x8x32xf32>,
    return
  }
  func.func @transform_0(%arg0: i32, %arg1: i32) -> (i32, i32, i32) {
    %c0_i32 = arith.constant 0 : i32
    %c0_i32_0 = arith.constant 0 : i32
    %c0_i32_1 = arith.constant 0 : i32
    return %arg0, %c0_i32, %c0_i32_0 : i32, i32, i32
  }
  func.func @transform_1(%arg0: i32, %arg1: i32) -> (i32, i32) {
    %c0_i32 = arith.constant 0 : i32
    %c0_i32_0 = arith.constant 0 : i32
    %c0_i32_1 = arith.constant 0 : i32
    return %c0_i32, %c0_i32_0 : i32, i32
  }
  func.func @transform_2(%arg0: i32, %arg1: i32) -> (i32, i32, i32) {
    %c0_i32 = arith.constant 0 : i32
    %c0_i32_0 = arith.constant 0 : i32
    return %arg0, %arg1, %c0_i32 : i32, i32, i32
  }
}

</mosaic_0001>

<llo_original>
// kernel: tpu_custom_call.1
$region0: #{tpu_custom_call.1}
  #allocation0 [shape = 'u32[]', space=smem, size = 0x4, offset = 0x4, fixed_abs, tag = 'smem constant byte address 0x4 - core index']
  #allocation1 [shape = 'u32[144,128]{1,0:T(1,128)}', space=vmem, size = 0x12000, scoped, tag = 'internal scratch']
  %s0 = inlined_call_operand.vmem [shape: f32[2,16,4], index: 0, kind: input, shape index: {}]
  %s1 = inlined_call_operand.vmem [shape: f32[12,32], index: 1, kind: input, shape index: {}]
  %s2 = inlined_call_operand.hbm [shape: f32[2,8,32], index: 2, kind: output, shape index: {}]
  %s3 = sld [smem:[#allocation0]]
  $region41: #{tpu_custom_call.1} parent=0
    _
  %s5 = ssub.s32 1, %s3
  %s6 = scalar_select 0, %s5, %s3
  $region1: #{tpu_custom_call.1} parent=0
    #allocation2 [shape = 'u8[8192]{0}', space=vmem, size = 0x2000, scoped, tag = 'output window, operand 0']
    #allocation3 [shape = 's32[2]{0}', space=sflag, size = 0x8, scoped, tag = 'scoped memory for tpu_custom_call.1']
    %7 = vsyncpa [#allocation3], 0
    %s8 = scalar_lea.sflag [#allocation3], 1
    %9 = vsyncpa %s8, 0
    loop: start=0, step=1, limit=4
    $region2: #{tpu_custom_call.1} parent=1 // loop_pre_header
      _
    $region3: #{tpu_custom_call.1} parent=1 // loop_header
      %s11 = sphi 0, %s15
      %p12 = scmp.ge.s32.totalorder %s11, 4
      %s18 = sphi 0, %s30
      %s19 = sphi 0, %s26
      %s20 = sphi 0, %s18
      %s21 = sphi 0, %s19
      %s22 = sphi 0, %s20
      %s23 = sphi 0, %s21
      %s33 = sphi 0, %s35
      %s36 = sphi 0, %s33
      %s37 = sphi 0, %s36
      %s53 = sphi 0, %s37
      %s57 = sphi 0, %s57
      %s59 = sphi 0, %s57
      %s60 = sphi 0, %s59
      %s74 = sphi 0, %s60
      %s82 = sphi 0, %s84
      %s85 = sphi 0, %s82
      %s86 = sphi 0, %s85
      %s102 = sphi 0, %s86
    $region4: #{tpu_custom_call.1} parent=1 // loop_header_branch
      %14 = sbr.rel (%p12) target = $region8
    $region5: #{tpu_custom_call.1} parent=1 // loop_body
      %s16 = ssub.s32 %s11, 1
      %s17 = ssub.s32 %s11, 2
      %s24 = sadd.s32 1, %s19
      %p25 = scmp.ge.s32.totalorder %s24, 1
      %s26 = scalar_select %p25, 0, %s24
      %s27 = sadd.s32 1, %s18
      %s28 = scalar_select %p25, %s27, %s18
      %p29 = scmp.ge.s32.totalorder %s28, 2
      %s30 = scalar_select %p29, 0, %s28
      %s31 = ssub.s32 %s18, %s30
      %p32 = scmp.eq.s32.totalorder %s31, 0
      %s34 = sadd.s32 %s33, 1
      %s35 = scalar_select %p32, %s33, %s34
      %p38 = pneg %p32
      %p39 = scmp.eq.s32.totalorder %s11, 1
      %p40 = por %p38, %p39
      %p41 = scmp.ne.s32.totalorder %s33, %s36
      %p42 = scmp.eq.s32.totalorder %s11, 0
      %p43 = por %p41, %p42
      %p44 = scmp.ne.s32.totalorder %s33, %s36
      %p45 = scmp.eq.s32.totalorder %s16, 1
      %p46 = por %p44, %p45
      %p47 = scmp.ne.s32.totalorder %s36, %s37
      %p48 = scmp.eq.s32.totalorder %s16, 0
      %p49 = por %p47, %p48
      %p50 = scmp.ne.s32.totalorder %s36, %s37
      %p51 = scmp.eq.s32.totalorder %s17, 1
      %p52 = por %p50, %p51
      %p54 = scmp.ne.s32.totalorder %s37, %s53
      %p55 = scmp.eq.s32.totalorder %s17, 0
      %p56 = por %p54, %p55
      %s58 = sadd.s32 %s57, 1
      %p61 = scmp.eq.s32.totalorder %s11, 1
      %p62 = scmp.ne.s32.totalorder %s57, %s59
      %p63 = scmp.eq.s32.totalorder %s11, 0
      %p64 = por %p62, %p63
      %p65 = scmp.ne.s32.totalorder %s57, %s59
      %p66 = scmp.eq.s32.totalorder %s16, 1
      %p67 = por %p65, %p66
      %p68 = scmp.ne.s32.totalorder %s59, %s60
      %p69 = scmp.eq.s32.totalorder %s16, 0
      %p70 = por %p68, %p69
      %p71 = scmp.ne.s32.totalorder %s59, %s60
      %p72 = scmp.eq.s32.totalorder %s17, 1
      %p73 = por %p71, %p72
      %p75 = scmp.ne.s32.totalorder %s60, %s74
      %p76 = scmp.eq.s32.totalorder %s17, 0
      %p77 = por %p75, %p76
      %s78 = ssub.s32 %s18, %s30
      %s79 = ssub.s32 %s19, %s26
      %s80 = sor.u32 %s78, %s79
      %p81 = scmp.eq.s32.totalorder %s80, 0
      %s83 = sadd.s32 %s82, 1
      %s84 = scalar_select %p81, %s82, %s83
      %p87 = pneg %p81
      %p88 = scmp.eq.s32.totalorder %s11, 1
      %p89 = por %p87, %p88
      %p90 = scmp.ne.s32.totalorder %s82, %s85
      %p91 = scmp.eq.s32.totalorder %s11, 0
      %p92 = por %p90, %p91
      %p93 = scmp.ne.s32.totalorder %s82, %s85
      %p94 = scmp.eq.s32.totalorder %s16, 1
      %p95 = por %p93, %p94
      %p96 = scmp.ne.s32.totalorder %s85, %s86
      %p97 = scmp.eq.s32.totalorder %s16, 0
      %p98 = por %p96, %p97
      %p99 = scmp.ne.s32.totalorder %s85, %s86
      %p100 = scmp.eq.s32.totalorder %s17, 1
      %p101 = por %p99, %p100
      %p103 = scmp.ne.s32.totalorder %s86, %s102
      %p104 = scmp.eq.s32.totalorder %s17, 0
      %p105 = por %p103, %p104
      %p106 = scmp.le.s32.totalorder 1, %s11
      %p107 = scmp.lt.s32.totalorder %s11, 3
      %p108 = pnand %p106, %p107
      %p109 = pneg %p108
      // Predicated region
      $region9: #{tpu_custom_call.1} parent=5 // pred_check
        _
      $region10: #{tpu_custom_call.1} parent=5 // pred_check_branch
        %111 = sbr.rel (%p108) target = $region12
      $region11: #{tpu_custom_call.1} parent=5 // pred_region
        %s112 = ssub.s32 %s11, 1
        // Predicated region
        $region13: #{tpu_custom_call.1} parent=11 // pred_check
          %p113 = pneg %p70
        $region14: #{tpu_custom_call.1} parent=11 // pred_check_branch
          %115 = sbr.rel (%p113) target = $region16
        $region15: #{tpu_custom_call.1} parent=11 // pred_region
          _
        $region16: #{tpu_custom_call.1} parent=11 // pred_fallthru
          _
      $region12: #{tpu_custom_call.1} parent=5 // pred_fallthru
        _
      %p116 = scmp.lt.s32.totalorder %s11, 2
      // Predicated region
      $region17: #{tpu_custom_call.1} parent=5 // pred_check
        %p117 = pneg %p116
      $region18: #{tpu_custom_call.1} parent=5 // pred_check_branch
        %119 = sbr.rel (%p117) target = $region20
      $region19: #{tpu_custom_call.1} parent=5 // pred_region
        // Predicated region
        $region21: #{tpu_custom_call.1} parent=19 // pred_check
          %p120 = pneg %p43
        $region22: #{tpu_custom_call.1} parent=19 // pred_check_branch
          %122 = sbr.rel (%p120) target = $region24
        $region23: #{tpu_custom_call.1} parent=19 // pred_region
          %p123 = scmp.lt.s32.totalorder %s18, 1
          %s124 = scalar_select %p123, %s18, 1
          %s125 = smul.addr %s124, 2
          %s126 = smul.addr %s125, 8
          %s127 = scalar_lea.vmem %s0, %s126
        $region24: #{tpu_custom_call.1} parent=19 // pred_fallthru
          _
      $region20: #{tpu_custom_call.1} parent=5 // pred_fallthru
        _
      %p128 = scmp.le.s32.totalorder 1, %s11
      %p129 = scmp.lt.s32.totalorder %s11, 3
      %p130 = pnand %p128, %p129
      %p131 = pneg %p130
      // Predicated region
      $region25: #{tpu_custom_call.1} parent=5 // pred_check
        _
      $region26: #{tpu_custom_call.1} parent=5 // pred_check_branch
        %133 = sbr.rel (%p130) target = $region28
      $region27: #{tpu_custom_call.1} parent=5 // pred_region
        %s134 = ssub.s32 %s11, 1
        %p135 = scmp.lt.s32.totalorder %s20, 1
        %s136 = scalar_select %p135, %s20, 1
        %s137 = smul.addr %s136, 2
        %s138 = smul.addr %s137, 8
        %s139 = scalar_lea.vmem %s0, %s138
        %p140 = pneg %p49
        %p141 = pneg %p46
        %p142 = pneg %p70
        %p143 = pneg %p67
        %p144 = pneg %p98
        %p145 = pneg %p95
        %s146 = sand.u32 %s85, 1
        %s147 = scalar_lea.sflag [#allocation3], %s146
        %s148 = sand.u32 %s85, 1
        %s149 = smul.addr %s148, 8
        %s150 = scalar_lea.vmem [#allocation2], %s149
        %p151 = scmp.lt.s32.totalorder %s20, 1
        %s152 = scalar_select %p151, %s20, 1
        %s153 = smul.addr %s152, 2
        %s154 = smul.addr %s153, 8
        %s155 = scalar_lea.vmem %s0, %s154
        %s156 = smul.u32 %s21, 8
        %s157 = scalar_lea.vmem %s155, %s156
        %v158 = vld [vmem:[%s157] sm:$0xff]
        %v159 = vld [vmem:[%s157 + $0x8] sm:$0xff]
        %v160 = vld [vmem:[%s1] sm:$0xf]
        %v161 = vld [vmem:[%s1 + $0x4] sm:$0xf]
        %vm164 = vcmask 1046528
        %v165 = vrot.slane %v158, 1
        %v166 = vrot.slane %v159, 1
        %v167 = vsel %vm164, %v165, %v166
        %vm168 = vcmask 31744
        %v169 = vsel %vm168, %v167, 0
        %vm171 = vcmask 1043456
        %v173 = vsel %vm171, %v161, 0
        %175 = vmatprep.subr.mxu0 0.0
        %176 = vmatpush1.msra.mxu0 0.0
        %177 = vmatprep.subr.mxu0 0.0
        %178 = vmatpush1.msra.mxu0 0.0
        %179 = vmatprep.subr.mxu0 0.0
        %180 = vmatpush1.msra.mxu0 0.0
        %181 = vmatprep.subr.mxu0 0.0
        %182 = vmatpush1.msra.mxu0 0.0
        %183 = vmatprep.subr.mxu0 0.0
        %184 = vmatpush1.msra.mxu0 0.0
        %185 = vmatprep.subr.mxu0 0.0
        %186 = vmatpush1.msra.mxu0 0.0
        %187 = vmatprep.subr.mxu0 0.0
        %188 = vmatpush1.msra.mxu0 0.0
        %189 = vmatprep.subr.mxu0 0.0
        %190 = vmatpush1.msra.mxu0 0.0
        %191 = vmatprep.subr.mxu0 0.0
        %192 = vmatpush1.msra.mxu0 0.0
        %193 = vmatprep.subr.mxu0 0.0
        %194 = vmatpush1.msra.mxu0 0.0
        %195 = vmatprep.subr.mxu0 0.0
        %196 = vmatpush1.msra.mxu0 0.0
        %197 = vmatprep.subr.mxu0 0.0
        %198 = vmatpush1.msra.mxu0 0.0
        %199 = vmatprep.subr.mxu0 0.0
        %200 = vmatpush1.msra.mxu0 0.0
        %201 = vmatprep.subr.mxu0 0.0
        %202 = vmatpush1.msra.mxu0 0.0
        %203 = vmatprep.subr.mxu0 0.0
        %204 = vmatpush1.msra.mxu0 0.0
        %205 = vmatprep.subr.mxu0 0.0
        %206 = vmatpush1.msra.mxu0 %v173
        %207 = vmatprep.subr.mxu0 0.0
        %208 = vmatpush2.msra.mxu0 0.0
        %209 = vmatprep.subr.mxu0 0.0
        %210 = vmatpush2.msra.mxu0 0.0
        %211 = vmatprep.subr.mxu0 0.0
        %212 = vmatpush2.msra.mxu0 0.0
        %213 = vmatprep.subr.mxu0 0.0
        %214 = vmatpush2.msra.mxu0 0.0
        %215 = vmatprep.subr.mxu0 0.0
        %216 = vmatpush2.msra.mxu0 0.0
        %217 = vmatprep.subr.mxu0 0.0
        %218 = vmatpush2.msra.mxu0 0.0
        %219 = vmatprep.subr.mxu0 0.0
        %220 = vmatpush2.msra.mxu0 0.0
        %221 = vmatprep.subr.mxu0 0.0
        %222 = vmatpush2.msra.mxu0 0.0
        %223 = vmatprep.subr.mxu0 0.0
        %224 = vmatpush2.msra.mxu0 0.0
        %225 = vmatprep.subr.mxu0 0.0
        %226 = vmatpush2.msra.mxu0 0.0
        %227 = vmatprep.subr.mxu0 0.0
        %228 = vmatpush2.msra.mxu0 0.0
        %229 = vmatprep.subr.mxu0 0.0
        %230 = vmatpush2.msra.mxu0 0.0
        %231 = vmatprep.subr.mxu0 0.0
        %232 = vmatpush2.msra.mxu0 0.0
        %233 = vmatprep.subr.mxu0 0.0
        %234 = vmatpush2.msra.mxu0 0.0
        %235 = vmatprep.subr.mxu0 0.0
        %236 = vmatpush2.msra.mxu0 0.0
        %237 = vmatprep.subr.mxu0 0.0
        %238 = vmatpush2.msra.mxu0 0.0
        %239 = vmatprep.mubr.f32.mxu0 0.0
        %240 = vmatmul.mubr.f32.gmra.mxu0 %v169
        %v241 = vpop.f32.mrf.mxu0
        %v242 = vadd.f32 0.0, %v241
        %v243 = vpop.f32.mrf.mxu0
        %244 = vdwg.mxu0
        %v245 = vsel %vm168, %v158, 0
        %v248 = vsel %vm171, %v160, 0
        %250 = vmatprep.subr.mxu0 0.0
        %251 = vmatpush1.msra.mxu0 0.0
        %252 = vmatprep.subr.mxu0 0.0
        %253 = vmatpush1.msra.mxu0 0.0
        %254 = vmatprep.subr.mxu0 0.0
        %255 = vmatpush1.msra.mxu0 0.0
        %256 = vmatprep.subr.mxu0 0.0
        %257 = vmatpush1.msra.mxu0 0.0
        %258 = vmatprep.subr.mxu0 0.0
        %259 = vmatpush1.msra.mxu0 0.0
        %260 = vmatprep.subr.mxu0 0.0
        %261 = vmatpush1.msra.mxu0 0.0
        %262 = vmatprep.subr.mxu0 0.0
        %263 = vmatpush1.msra.mxu0 0.0
        %264 = vmatprep.subr.mxu0 0.0
        %265 = vmatpush1.msra.mxu0 0.0
        %266 = vmatprep.subr.mxu0 0.0
        %267 = vmatpush1.msra.mxu0 0.0
        %268 = vmatprep.subr.mxu0 0.0
        %269 = vmatpush1.msra.mxu0 0.0
        %270 = vmatprep.subr.mxu0 0.0
        %271 = vmatpush1.msra.mxu0 0.0
        %272 = vmatprep.subr.mxu0 0.0
        %273 = vmatpush1.msra.mxu0 0.0
        %274 = vmatprep.subr.mxu0 0.0
        %275 = vmatpush1.msra.mxu0 0.0
        %276 = vmatprep.subr.mxu0 0.0
        %277 = vmatpush1.msra.mxu0 0.0
        %278 = vmatprep.subr.mxu0 0.0
        %279 = vmatpush1.msra.mxu0 0.0
        %280 = vmatprep.subr.mxu0 0.0
        %281 = vmatpush1.msra.mxu0 %v248
        %282 = vmatprep.subr.mxu0 0.0
        %283 = vmatpush2.msra.mxu0 0.0
        %284 = vmatprep.subr.mxu0 0.0
        %285 = vmatpush2.msra.mxu0 0.0
        %286 = vmatprep.subr.mxu0 0.0
        %287 = vmatpush2.msra.mxu0 0.0
        %288 = vmatprep.subr.mxu0 0.0
        %289 = vmatpush2.msra.mxu0 0.0
        %290 = vmatprep.subr.mxu0 0.0
        %291 = vmatpush2.msra.mxu0 0.0
        %292 = vmatprep.subr.mxu0 0.0
        %293 = vmatpush2.msra.mxu0 0.0
        %294 = vmatprep.subr.mxu0 0.0
        %295 = vmatpush2.msra.mxu0 0.0
        %296 = vmatprep.subr.mxu0 0.0
        %297 = vmatpush2.msra.mxu0 0.0
        %298 = vmatprep.subr.mxu0 0.0
        %299 = vmatpush2.msra.mxu0 0.0
        %300 = vmatprep.subr.mxu0 0.0
        %301 = vmatpush2.msra.mxu0 0.0
        %302 = vmatprep.subr.mxu0 0.0
        %303 = vmatpush2.msra.mxu0 0.0
        %304 = vmatprep.subr.mxu0 0.0
        %305 = vmatpush2.msra.mxu0 0.0
        %306 = vmatprep.subr.mxu0 0.0
        %307 = vmatpush2.msra.mxu0 0.0
        %308 = vmatprep.subr.mxu0 0.0
        %309 = vmatpush2.msra.mxu0 0.0
        %310 = vmatprep.subr.mxu0 0.0
        %311 = vmatpush2.msra.mxu0 0.0
        %312 = vmatprep.subr.mxu0 0.0
        %313 = vmatpush2.msra.mxu0 0.0
        %314 = vmatprep.mubr.f32.mxu0 0.0
        %315 = vmatmul.mubr.f32.gmra.mxu0 %v245
        %v316 = vpop.f32.mrf.mxu0
        %v317 = vadd.f32 %v242, %v316
        %v318 = vpop.f32.mrf.mxu0
        %319 = vdwg.mxu0
        %v320 = vld [vmem:[%s1 + $0x8] sm:$0xf]
        %vm321 = vcmask 1045504
        %v322 = vrot.slane %v158, 2
        %v323 = vrot.slane %v159, 2
        %v324 = vsel %vm321, %v322, %v323
        %v325 = vsel %vm168, %v324, 0
        %v328 = vsel %vm171, %v320, 0
        %330 = vmatprep.subr.mxu0 0.0
        %331 = vmatpush1.msra.mxu0 0.0
        %332 = vmatprep.subr.mxu0 0.0
        %333 = vmatpush1.msra.mxu0 0.0
        %334 = vmatprep.subr.mxu0 0.0
        %335 = vmatpush1.msra.mxu0 0.0
        %336 = vmatprep.subr.mxu0 0.0
        %337 = vmatpush1.msra.mxu0 0.0
        %338 = vmatprep.subr.mxu0 0.0
        %339 = vmatpush1.msra.mxu0 0.0
        %340 = vmatprep.subr.mxu0 0.0
        %341 = vmatpush1.msra.mxu0 0.0
        %342 = vmatprep.subr.mxu0 0.0
        %343 = vmatpush1.msra.mxu0 0.0
        %344 = vmatprep.subr.mxu0 0.0
        %345 = vmatpush1.msra.mxu0 0.0
        %346 = vmatprep.subr.mxu0 0.0
        %347 = vmatpush1.msra.mxu0 0.0
        %348 = vmatprep.subr.mxu0 0.0
        %349 = vmatpush1.msra.mxu0 0.0
        %350 = vmatprep.subr.mxu0 0.0
        %351 = vmatpush1.msra.mxu0 0.0
        %352 = vmatprep.subr.mxu0 0.0
        %353 = vmatpush1.msra.mxu0 0.0
        %354 = vmatprep.subr.mxu0 0.0
        %355 = vmatpush1.msra.mxu0 0.0
        %356 = vmatprep.subr.mxu0 0.0
        %357 = vmatpush1.msra.mxu0 0.0
        %358 = vmatprep.subr.mxu0 0.0
        %359 = vmatpush1.msra.mxu0 0.0
        %360 = vmatprep.subr.mxu0 0.0
        %361 = vmatpush1.msra.mxu0 %v328
        %362 = vmatprep.subr.mxu0 0.0
        %363 = vmatpush2.msra.mxu0 0.0
        %364 = vmatprep.subr.mxu0 0.0
        %365 = vmatpush2.msra.mxu0 0.0
        %366 = vmatprep.subr.mxu0 0.0
        %367 = vmatpush2.msra.mxu0 0.0
        %368 = vmatprep.subr.mxu0 0.0
        %369 = vmatpush2.msra.mxu0 0.0
        %370 = vmatprep.subr.mxu0 0.0
        %371 = vmatpush2.msra.mxu0 0.0
        %372 = vmatprep.subr.mxu0 0.0
        %373 = vmatpush2.msra.mxu0 0.0
        %374 = vmatprep.subr.mxu0 0.0
        %375 = vmatpush2.msra.mxu0 0.0
        %376 = vmatprep.subr.mxu0 0.0
        %377 = vmatpush2.msra.mxu0 0.0
        %378 = vmatprep.subr.mxu0 0.0
        %379 = vmatpush2.msra.mxu0 0.0
        %380 = vmatprep.subr.mxu0 0.0
        %381 = vmatpush2.msra.mxu0 0.0
        %382 = vmatprep.subr.mxu0 0.0
        %383 = vmatpush2.msra.mxu0 0.0
        %384 = vmatprep.subr.mxu0 0.0
        %385 = vmatpush2.msra.mxu0 0.0
        %386 = vmatprep.subr.mxu0 0.0
        %387 = vmatpush2.msra.mxu0 0.0
        %388 = vmatprep.subr.mxu0 0.0
        %389 = vmatpush2.msra.mxu0 0.0
        %390 = vmatprep.subr.mxu0 0.0
        %391 = vmatpush2.msra.mxu0 0.0
        %392 = vmatprep.subr.mxu0 0.0
        %393 = vmatpush2.msra.mxu0 0.0
        %394 = vmatprep.mubr.f32.mxu0 0.0
        %395 = vmatmul.mubr.f32.gmra.mxu0 %v325
        %v396 = vpop.f32.mrf.mxu0
        %v397 = vadd.f32 0.0, %v396
        %v398 = vpop.f32.mrf.mxu0
        %399 = vdwg.mxu0
        %v400 = vadd.f32 %v317, %v397
        %vm401 = vcmask 261120
        %402 = vst.msk [vmem:[%s150] sm:$0xff] %vm401, %v400
        %s403 = sand.u32 %s85, 1
        %s404 = scalar_lea.sflag [#allocation3], %s403
        %s405 = sand.u32 %s85, 1
        %s406 = smul.addr %s405, 8
        %s407 = scalar_lea.vmem [#allocation2], %s406
        // Predicated region
        $region29: #{tpu_custom_call.1} parent=27 // pred_check
          %p408 = pneg %p95
        $region30: #{tpu_custom_call.1} parent=27 // pred_check_branch
          %410 = sbr.rel (%p408) target = $region32
        $region31: #{tpu_custom_call.1} parent=27 // pred_region
          %s412 = ssub.s32 128, 128
          %413 = vsyncadd %s404, %s412
          %s414 = sadd.s32 %s21, %s20
          %s415 = smul.addr %s414, 128
          %s416 = scalar_lea.hbm %s2, %s415
          %s418 = sshll.u32 %s407, 4
          %s419 = int_to_ptr.vmem [resolvable:$true] %s418
          %421 = dma.vmem_to_hbm [thread:$0]  %s419, 128, %s416, %s404
        $region32: #{tpu_custom_call.1} parent=27 // pred_fallthru
          _
      $region28: #{tpu_custom_call.1} parent=5 // pred_fallthru
        _
      %p422 = scmp.le.s32.totalorder 2, %s11
      // Predicated region
      $region33: #{tpu_custom_call.1} parent=5 // pred_check
        %p423 = pneg %p422
      $region34: #{tpu_custom_call.1} parent=5 // pred_check_branch
        %425 = sbr.rel (%p423) target = $region36
      $region35: #{tpu_custom_call.1} parent=5 // pred_region
        %s426 = ssub.s32 %s11, 2
        // Predicated region
        $region37: #{tpu_custom_call.1} parent=35 // pred_check
          %p427 = pneg %p101
        $region38: #{tpu_custom_call.1} parent=35 // pred_check_branch
          %429 = sbr.rel (%p427) target = $region40
        $region39: #{tpu_custom_call.1} parent=35 // pred_region
          %s430 = sand.u32 %s86, 1
          %s431 = scalar_lea.sflag [#allocation3], %s430
          %s432 = sand.u32 %s86, 1
          %s433 = smul.addr %s432, 8
          %s434 = scalar_lea.vmem [#allocation2], %s433
          %435 = dma.done %s431, 128
        $region40: #{tpu_custom_call.1} parent=35 // pred_fallthru
          _
      $region36: #{tpu_custom_call.1} parent=5 // pred_fallthru
        _
    $region6: #{tpu_custom_call.1} parent=1 // loop_footer
      %s15 = sadd.s32 1, %s11
    $region7: #{tpu_custom_call.1} parent=1 // loop_footer_branch
      %10 = sbr.rel target = $region3
    $region8: #{tpu_custom_call.1} parent=1 // loop_exit
      _
    %436 = vsyncpa [#allocation3], 1
    %s437 = scalar_lea.sflag [#allocation3], 1
    %438 = vsyncpa %s437, 1

</llo_original>
